<compile_context>
chip_gen: v5e
topology: v5e:2x2
jax: 0.10.0
libtpu: 0.0.40
codegen_flags: <defaults>
</compile_context>

<pallas_src>
import jax
import jax.numpy as jnp
from jax.experimental import pallas as pl
from jax.experimental.pallas import tpu as pltpu


def _round_up(x, m):
    return ((x + m - 1) // m) * m


def _linear_head_kernel(x_ref, w_ref, b_ref, o_ref):
    # x_ref: (tm, H) f32/bf16   w_ref: (H, T_pad) f32/bf16
    # b_ref: (1, T_pad) f32     o_ref: (tm, T) f32, T <= T_pad
    # Cast MXU operands in-register (no extra HBM pass), accumulate in f32.
    x = x_ref[...].astype(jnp.bfloat16)
    w = w_ref[...].astype(jnp.bfloat16)
    acc = jnp.dot(x, w, preferred_element_type=jnp.float32)
    t = o_ref.shape[-1]
    o_ref[...] = (acc + b_ref[...])[:, :t]


def _choose_tm(M, tm):
    # Multiple-of-8 row tile, never larger than the (rounded-up) problem.
    tm = max(8, min(tm, _round_up(M, 8)))
    tm = (tm // 8) * 8
    if M > 8:
        # Keep the parallel row grid at >= 2 steps so v7x's two TensorCores
        # both get work (grid collapsing to 1 step idles one TC).
        half = _round_up(pl.cdiv(M, 2), 8)
        tm = min(tm, half)
    return max(8, tm)


def linear_head_pallas(hiddens_2d, w_t, b, *, tm=1024):
    """hiddens_2d: (M, H), w_t: (H, T), b: (T,) -> (M, T) f32 logits."""
    M, H = hiddens_2d.shape
    H_w, T = w_t.shape
    assert H == H_w and b.shape == (T,)

    # Lane-dense operands for the MXU only; the HBM output stays unpadded.
    T_pad = _round_up(T, 128)
    tm = _choose_tm(M, tm)
    grid = (pl.cdiv(M, tm),)  # ragged tail handled by masked edge writes

    # Tiny operand padding (weights/bias only): negligible HBM traffic.
    w = w_t
    if T_pad != T:
        w = jnp.pad(w, ((0, 0), (0, T_pad - T)))
    b2 = jnp.pad(b.astype(jnp.float32), (0, T_pad - T)).reshape(1, T_pad)

    x_itemsize = jnp.dtype(hiddens_2d.dtype).itemsize
    w_itemsize = jnp.dtype(w.dtype).itemsize
    cost = pl.CostEstimate(
        flops=2 * M * H * T_pad,
        transcendentals=0,
        bytes_accessed=M * H * x_itemsize + H * T_pad * w_itemsize
        + T_pad * 4 + M * T * 4,
    )

    out = pl.pallas_call(
        _linear_head_kernel,
        out_shape=jax.ShapeDtypeStruct((M, T), jnp.float32),
        grid_spec=pltpu.PrefetchScalarGridSpec(
            num_scalar_prefetch=0,
            grid=grid,
            in_specs=[
                pl.BlockSpec((tm, H), lambda i: (i, 0)),
                pl.BlockSpec((H, T_pad), lambda i: (0, 0)),
                pl.BlockSpec((1, T_pad), lambda i: (0, 0)),
            ],
            out_specs=pl.BlockSpec((tm, T), lambda i: (i, 0)),
        ),
        compiler_params=pltpu.CompilerParams(
            # Row axis is independent -> parallel (lets v7x shard across 2 TCs).
            dimension_semantics=("parallel",),
        ),
        cost_estimate=cost,
    )(hiddens_2d, w, b2)

    return out


def bert_tagger_forward(hiddens, linear_w, linear_b, *, tm=1024):
    """
    hiddens:  (bsz, seq_len, hidden_dim)  -- stands in for model(X)[1][-1]
    linear_w: (num_tag, hidden_dim)       -- nn.Linear weight layout
    linear_b: (num_tag,)
    Returns (prediction (bsz, seq_len, num_tag), hcl_loss=0) matching the
    non-target_sequence branch of BertTagger.forward.
    """
    bsz, seq_len, hidden_dim = hiddens.shape
    num_tag = linear_w.shape[0]
    x2d = hiddens.reshape(bsz * seq_len, hidden_dim)
    w_t = linear_w.T  # transposed once in the wrapper, outside the kernel
    pred2d = linear_head_pallas(x2d, w_t, linear_b, tm=tm)
    prediction = pred2d.reshape(bsz, seq_len, num_tag)
    hcl_loss = 0  # matches the torch branch (Python int, not a traced array)
    return prediction, hcl_loss


if __name__ == "__main__":
    # Small shapes implied by the module: (bsz, seq_len, hidden_dim) -> num_tag
    bsz, seq_len, hidden_dim, num_tag = 2, 8, 32, 8

    key = jax.random.PRNGKey(0)
    k_h, k_w, k_b = jax.random.split(key, 3)

    # Deterministic synthetic "last hidden state" of the (untranslatable) backbone.
    hiddens = jax.random.normal(k_h, (bsz, seq_len, hidden_dim), dtype=jnp.float32)

    # nn.Linear(hidden_dim, num_tag) default init: U(-1/sqrt(H), 1/sqrt(H))
    bound = 1.0 / (hidden_dim ** 0.5)
    linear_w = jax.random.uniform(
        k_w, (num_tag, hidden_dim), minval=-bound, maxval=bound, dtype=jnp.float32
    )
    linear_b = jax.random.uniform(
        k_b, (num_tag,), minval=-bound, maxval=bound, dtype=jnp.float32
    )

    prediction, hcl_loss = bert_tagger_forward(hiddens, linear_w, linear_b)
    prediction = jax.block_until_ready(prediction)

    assert prediction.shape == (bsz, seq_len, num_tag)
    assert prediction.dtype == jnp.float32
    assert hcl_loss == 0

    # Reference 1: bf16-operand / f32-accumulate einsum (same dtype contract as
    # the in-kernel MXU path) -> tight tolerance.
    h_bf = hiddens.astype(jnp.bfloat16).astype(jnp.float32)
    w_bf = linear_w.astype(jnp.bfloat16).astype(jnp.float32)
    ref_bf16 = (
        jnp.einsum("bsh,th->bst", h_bf, w_bf, precision=jax.lax.Precision.HIGHEST)
        + linear_b
    )
    assert jnp.allclose(prediction, ref_bf16, atol=1e-3, rtol=1e-3)

    # Reference 2: full-f32 linear head (module semantics) -> loose tolerance
    # accounting for the bf16 operand cast on the MXU.
    ref_f32 = (
        jnp.einsum(
            "bsh,th->bst", hiddens, linear_w, precision=jax.lax.Precision.HIGHEST
        )
        + linear_b
    )
    assert jnp.allclose(prediction, ref_f32, atol=5e-2, rtol=5e-2)

    # Exercise the ragged-M path (M % tm != 0) against the same references.
    bsz2, seq2 = 3, 7  # M = 21, not a multiple of 8
    h2 = jax.random.normal(k_h, (bsz2, seq2, hidden_dim), dtype=jnp.float32)
    pred2, _ = bert_tagger_forward(h2, linear_w, linear_b, tm=8)
    pred2 = jax.block_until_ready(pred2)
    ref2 = (
        jnp.einsum("bsh,th->bst", h2, linear_w, precision=jax.lax.Precision.HIGHEST)
        + linear_b
    )
    assert pred2.shape == (bsz2, seq2, num_tag)
    assert jnp.allclose(pred2, ref2, atol=5e-2, rtol=5e-2)

    print("KERNEL_OK")
</pallas_src>

<mosaic_0001>
module attributes {stable_mosaic.version = 11 : i64} {
  func.func @_linear_head_kernel(%arg0: i32, %arg1: memref<8x32xf32, #tpu.memory_space<vmem>>, %arg2: memref<32x128xf32, #tpu.memory_space<vmem>>, %arg3: memref<1x128xf32, #tpu.memory_space<vmem>>, %arg4: memref<8x8xf32, #tpu.memory_space<vmem>>) attributes {dimension_semantics = [#tpu.dimension_semantics<parallel>], iteration_bounds = array<i64: 2>, scalar_prefetch = 0 : i64, scratch_operands = 0 : i64, tpu.core_type = #tpu.core_type<tc>, window_params = [{transform_indices = @transform_0, window_bounds = array<i64: 8, 32>}, {pipeline_mode = #tpu.pipeline_mode<synchronous>, transform_indices = @transform_1, window_bounds = array<i64: 32, 128>}, {pipeline_mode = #tpu.pipeline_mode<synchronous>, transform_indices = @transform_2, window_bounds = array<i64: 1, 128>}, {transform_indices = @transform_3, window_bounds = array<i64: 8, 8>}]} {
    %c0 = arith.constant 0 : index
    %c0_0 = arith.constant 0 : index
    %0 = vector.load %arg1[%c0, %c0_0] : memref<8x32xf32, #tpu.memory_space<vmem>>, vector<8x32xf32>
    %1 = arith.truncf %0 : vector<8x32xf32> to vector<8x32xbf16>
    %c0_1 = arith.constant 0 : index
    %c0_2 = arith.constant 0 : index
    %2 = vector.load %arg2[%c0_1, %c0_2] : memref<32x128xf32, #tpu.memory_space<vmem>>, vector<32x128xf32>
    %3 = arith.truncf %2 : vector<32x128xf32> to vector<32x128xbf16>
    %cst = arith.constant dense<0.000000e+00> : vector<8x128xf32>
    %4 = tpu.matmul %1, %3, %cst {dimension_numbers = #tpu.dot_dimension_numbers<[1], [0], [0], [1], [0, 0, 1, 1], [], []>} : vector<8x32xbf16>, vector<32x128xbf16>, vector<8x128xf32> -> vector<8x128xf32>
    %c0_3 = arith.constant 0 : index
    %c0_4 = arith.constant 0 : index
    %5 = vector.load %arg3[%c0_3, %c0_4] : memref<1x128xf32, #tpu.memory_space<vmem>>, vector<1x128xf32>
    %6 = vector.broadcast %5 : vector<1x128xf32> to vector<8x128xf32>
    %7 = arith.addf %4, %6 : vector<8x128xf32>
    %8 = vector.extract_strided_slice %7 {offsets = [0, 0], sizes = [8, 8], strides = [1, 1]} : vector<8x128xf32> to vector<8x8xf32>
    %c0_5 = arith.constant 0 : index
    %c0_6 = arith.constant 0 : index
    %9 = vector.load %arg4[%c0_5, %c0_6] : memref<8x8xf32, #tpu.memory_space<vmem>>, vector<8x8xf32>
    tpu.vector_store %arg4[%c0_5, %c0_6], %8 {strides = array<i32>} : memref<8x8xf32, #tpu.memory_space<vmem>>, vector<8x8xf32>,
    return
  }
  func.func @transform_0(%arg0: i32) -> (i32, i32) {
    %c0_i32 = arith.constant 0 : i32
    %c0_i32_0 = arith.constant 0 : i32
    return %arg0, %c0_i32 : i32, i32
  }
  func.func @transform_1(%arg0: i32) -> (i32, i32) {
    %c0_i32 = arith.constant 0 : i32
    %c0_i32_0 = arith.constant 0 : i32
    %c0_i32_1 = arith.constant 0 : i32
    return %c0_i32, %c0_i32_0 : i32, i32
  }
  func.func @transform_2(%arg0: i32) -> (i32, i32) {
    %c0_i32 = arith.constant 0 : i32
    %c0_i32_0 = arith.constant 0 : i32
    %c0_i32_1 = arith.constant 0 : i32
    return %c0_i32, %c0_i32_0 : i32, i32
  }
  func.func @transform_3(%arg0: i32) -> (i32, i32) {
    %c0_i32 = arith.constant 0 : i32
    %c0_i32_0 = arith.constant 0 : i32
    return %arg0, %c0_i32 : i32, i32
  }
}

</mosaic_0001>

<llo_original>
// kernel: tpu_custom_call.1
$region0: #{tpu_custom_call.1}
  #allocation0 [shape = 'u32[]', space=smem, size = 0x4, offset = 0x4, fixed_abs, tag = 'smem constant byte address 0x4 - core index']
  #allocation1 [shape = 'u32[72,128]{1,0:T(1,128)}', space=vmem, size = 0x9000, scoped, tag = 'internal scratch']
  %s0 = inlined_call_operand.hbm [shape: f32[16,32], index: 0, kind: input, shape index: {}]
  %s1 = inlined_call_operand.hbm [shape: f32[32,128], index: 1, kind: input, shape index: {}]
  %s2 = inlined_call_operand.vmem [shape: f32[1,128], index: 2, kind: input, shape index: {}]
  %s3 = inlined_call_operand.vmem [shape: f32[16,8], index: 3, kind: output, shape index: {}]
  %s4 = sld [smem:[#allocation0]]
  $region53: #{tpu_custom_call.1} parent=0
    _
  %s6 = ssub.s32 1, %s4
  %s7 = scalar_select 0, %s6, %s4
  $region1: #{tpu_custom_call.1} parent=0
    #allocation2 [shape = 'u8[8192]{0}', space=vmem, size = 0x2000, scoped, tag = 'input window, operand 0']
    #allocation3 [shape = 's32[2]{0}', space=sflag, size = 0x8, scoped, tag = 'scoped memory for tpu_custom_call.1']
    #allocation4 [shape = 'u8[16384]{0}', space=vmem, size = 0x4000, scoped, tag = 'input window, operand 1, single buffered']
    #allocation5 [shape = 's32[1]{0}', space=sflag, size = 0x4, scoped, tag = 'scoped memory for tpu_custom_call.1']
    %8 = vsyncpa [#allocation3], 0
    %s9 = scalar_lea.sflag [#allocation3], 1
    %10 = vsyncpa %s9, 0
    %11 = vsyncpa [#allocation5], 0
    loop: start=0, step=1, limit=4
    $region2: #{tpu_custom_call.1} parent=1 // loop_pre_header
      _
    $region3: #{tpu_custom_call.1} parent=1 // loop_header
      %s13 = sphi 0, %s17
      %p14 = scmp.ge.s32.totalorder %s13, 4
      %s23 = sphi 0, %s25
      %s26 = sphi 0, %s23
      %s27 = sphi 0, %s26
      %s43 = sphi 0, %s27
      %s47 = sphi 0, %s47
      %s49 = sphi 0, %s47
      %s50 = sphi 0, %s49
      %s64 = sphi 0, %s50
      %s68 = sphi 0, %s68
      %s70 = sphi 0, %s68
      %s71 = sphi 0, %s70
      %s85 = sphi 0, %s71
      %s91 = sphi 0, %s93
      %s94 = sphi 0, %s91
      %s95 = sphi 0, %s94
      %s111 = sphi 0, %s95
    $region4: #{tpu_custom_call.1} parent=1 // loop_header_branch
      %16 = sbr.rel (%p14) target = $region8
    $region5: #{tpu_custom_call.1} parent=1 // loop_body
      %s18 = ssub.s32 %s13, 1
      %s19 = ssub.s32 %s13, 2
      %s20 = sadd.s32 %s13, 1
      %s21 = ssub.s32 %s13, %s20
      %p22 = scmp.eq.s32.totalorder %s21, 0
      %s24 = sadd.s32 %s23, 1
      %s25 = scalar_select %p22, %s23, %s24
      %p28 = pneg %p22
      %p29 = scmp.eq.s32.totalorder %s13, 1
      %p30 = por %p28, %p29
      %p31 = scmp.ne.s32.totalorder %s23, %s26
      %p32 = scmp.eq.s32.totalorder %s13, 0
      %p33 = por %p31, %p32
      %p34 = scmp.ne.s32.totalorder %s23, %s26
      %p35 = scmp.eq.s32.totalorder %s18, 1
      %p36 = por %p34, %p35
      %p37 = scmp.ne.s32.totalorder %s26, %s27
      %p38 = scmp.eq.s32.totalorder %s18, 0
      %p39 = por %p37, %p38
      %p40 = scmp.ne.s32.totalorder %s26, %s27
      %p41 = scmp.eq.s32.totalorder %s19, 1
      %p42 = por %p40, %p41
      %p44 = scmp.ne.s32.totalorder %s27, %s43
      %p45 = scmp.eq.s32.totalorder %s19, 0
      %p46 = por %p44, %p45
      %s48 = sadd.s32 %s47, 1
      %p51 = scmp.eq.s32.totalorder %s13, 1
      %p52 = scmp.ne.s32.totalorder %s47, %s49
      %p53 = scmp.eq.s32.totalorder %s13, 0
      %p54 = por %p52, %p53
      %p55 = scmp.ne.s32.totalorder %s47, %s49
      %p56 = scmp.eq.s32.totalorder %s18, 1
      %p57 = por %p55, %p56
      %p58 = scmp.ne.s32.totalorder %s49, %s50
      %p59 = scmp.eq.s32.totalorder %s18, 0
      %p60 = por %p58, %p59
      %p61 = scmp.ne.s32.totalorder %s49, %s50
      %p62 = scmp.eq.s32.totalorder %s19, 1
      %p63 = por %p61, %p62
      %p65 = scmp.ne.s32.totalorder %s50, %s64
      %p66 = scmp.eq.s32.totalorder %s19, 0
      %p67 = por %p65, %p66
      %s69 = sadd.s32 %s68, 1
      %p72 = scmp.eq.s32.totalorder %s13, 1
      %p73 = scmp.ne.s32.totalorder %s68, %s70
      %p74 = scmp.eq.s32.totalorder %s13, 0
      %p75 = por %p73, %p74
      %p76 = scmp.ne.s32.totalorder %s68, %s70
      %p77 = scmp.eq.s32.totalorder %s18, 1
      %p78 = por %p76, %p77
      %p79 = scmp.ne.s32.totalorder %s70, %s71
      %p80 = scmp.eq.s32.totalorder %s18, 0
      %p81 = por %p79, %p80
      %p82 = scmp.ne.s32.totalorder %s70, %s71
      %p83 = scmp.eq.s32.totalorder %s19, 1
      %p84 = por %p82, %p83
      %p86 = scmp.ne.s32.totalorder %s71, %s85
      %p87 = scmp.eq.s32.totalorder %s19, 0
      %p88 = por %p86, %p87
      %s89 = ssub.s32 %s13, %s20
      %p90 = scmp.eq.s32.totalorder %s89, 0
      %s92 = sadd.s32 %s91, 1
      %s93 = scalar_select %p90, %s91, %s92
      %p96 = pneg %p90
      %p97 = scmp.eq.s32.totalorder %s13, 1
      %p98 = por %p96, %p97
      %p99 = scmp.ne.s32.totalorder %s91, %s94
      %p100 = scmp.eq.s32.totalorder %s13, 0
      %p101 = por %p99, %p100
      %p102 = scmp.ne.s32.totalorder %s91, %s94
      %p103 = scmp.eq.s32.totalorder %s18, 1
      %p104 = por %p102, %p103
      %p105 = scmp.ne.s32.totalorder %s94, %s95
      %p106 = scmp.eq.s32.totalorder %s18, 0
      %p107 = por %p105, %p106
      %p108 = scmp.ne.s32.totalorder %s94, %s95
      %p109 = scmp.eq.s32.totalorder %s19, 1
      %p110 = por %p108, %p109
      %p112 = scmp.ne.s32.totalorder %s95, %s111
      %p113 = scmp.eq.s32.totalorder %s19, 0
      %p114 = por %p112, %p113
      %p115 = scmp.le.s32.totalorder 1, %s13
      %p116 = scmp.lt.s32.totalorder %s13, 3
      %p117 = pnand %p115, %p116
      %p118 = pneg %p117
      // Predicated region
      $region9: #{tpu_custom_call.1} parent=5 // pred_check
        _
      $region10: #{tpu_custom_call.1} parent=5 // pred_check_branch
        %120 = sbr.rel (%p117) target = $region12
      $region11: #{tpu_custom_call.1} parent=5 // pred_region
        %s121 = ssub.s32 %s13, 1
        // Predicated region
        $region13: #{tpu_custom_call.1} parent=11 // pred_check
          %p122 = pneg %p60
        $region14: #{tpu_custom_call.1} parent=11 // pred_check_branch
          %124 = sbr.rel (%p122) target = $region16
        $region15: #{tpu_custom_call.1} parent=11 // pred_region
          %126 = vsyncadd [#allocation5], 0
          %s127 = sshll.u32 %s1, 4
          %s128 = int_to_ptr.hbm [resolvable:$true] %s127
          %s129 = sshll.u32 [#allocation4], 4
          %s130 = int_to_ptr.vmem [resolvable:$true] %s129
          %135 = dma.hbm_to_vmem [thread:$0]  %s128, 512, %s130, [#allocation5], 128, 128, 8
        $region16: #{tpu_custom_call.1} parent=11 // pred_fallthru
          _
        // Predicated region
        $region17: #{tpu_custom_call.1} parent=11 // pred_check
          %p136 = pneg %p81
        $region18: #{tpu_custom_call.1} parent=11 // pred_check_branch
          %138 = sbr.rel (%p136) target = $region20
        $region19: #{tpu_custom_call.1} parent=11 // pred_region
          _
        $region20: #{tpu_custom_call.1} parent=11 // pred_fallthru
          _
      $region12: #{tpu_custom_call.1} parent=5 // pred_fallthru
        _
      %p139 = scmp.lt.s32.totalorder %s13, 2
      // Predicated region
      $region21: #{tpu_custom_call.1} parent=5 // pred_check
        %p140 = pneg %p139
      $region22: #{tpu_custom_call.1} parent=5 // pred_check_branch
        %142 = sbr.rel (%p140) target = $region24
      $region23: #{tpu_custom_call.1} parent=5 // pred_region
        // Predicated region
        $region25: #{tpu_custom_call.1} parent=23 // pred_check
          %p143 = pneg %p33
        $region26: #{tpu_custom_call.1} parent=23 // pred_check_branch
          %145 = sbr.rel (%p143) target = $region28
        $region27: #{tpu_custom_call.1} parent=23 // pred_region
          %s146 = sand.u32 %s23, 1
          %s147 = scalar_lea.sflag [#allocation3], %s146
          %s148 = sand.u32 %s23, 1
          %s149 = smul.addr %s148, 8
          %s150 = scalar_lea.vmem [#allocation2], %s149
          %152 = vsyncadd %s147, 0
          %s153 = smul.addr %s13, 8
          %s154 = scalar_lea.hbm %s0, %s153
          %s156 = sshll.u32 %s154, 4
          %s157 = int_to_ptr.hbm [resolvable:$true] %s156
          %s158 = sshll.u32 %s150, 4
          %s159 = int_to_ptr.vmem [resolvable:$true] %s158
          %161 = dma.hbm_to_vmem [thread:$0]  %s157, 128, %s159, %s147
        $region28: #{tpu_custom_call.1} parent=23 // pred_fallthru
          _
      $region24: #{tpu_custom_call.1} parent=5 // pred_fallthru
        _
      %p162 = scmp.le.s32.totalorder 1, %s13
      %p163 = scmp.lt.s32.totalorder %s13, 3
      %p164 = pnand %p162, %p163
      %p165 = pneg %p164
      // Predicated region
      $region29: #{tpu_custom_call.1} parent=5 // pred_check
        _
      $region30: #{tpu_custom_call.1} parent=5 // pred_check_branch
        %167 = sbr.rel (%p164) target = $region32
      $region31: #{tpu_custom_call.1} parent=5 // pred_region
        %s168 = ssub.s32 %s13, 1
        %s169 = sand.u32 %s26, 1
        %s170 = scalar_lea.sflag [#allocation3], %s169
        %s171 = sand.u32 %s26, 1
        %s172 = smul.addr %s171, 8
        %s173 = scalar_lea.vmem [#allocation2], %s172
        // Predicated region
        $region33: #{tpu_custom_call.1} parent=31 // pred_check
          %p174 = pneg %p39
        $region34: #{tpu_custom_call.1} parent=31 // pred_check_branch
          %176 = sbr.rel (%p174) target = $region36
        $region35: #{tpu_custom_call.1} parent=31 // pred_region
          %178 = dma.done %s170, 128
        $region36: #{tpu_custom_call.1} parent=31 // pred_fallthru
          _
        // Predicated region
        $region37: #{tpu_custom_call.1} parent=31 // pred_check
          %p179 = pneg %p60
        $region38: #{tpu_custom_call.1} parent=31 // pred_check_branch
          %181 = sbr.rel (%p179) target = $region40
        $region39: #{tpu_custom_call.1} parent=31 // pred_region
          %183 = dma.done [#allocation5], 512
        $region40: #{tpu_custom_call.1} parent=31 // pred_fallthru
          _
        %s184 = sand.u32 %s26, 1
        %s185 = scalar_lea.sflag [#allocation3], %s184
        %s186 = sand.u32 %s26, 1
        %s187 = smul.addr %s186, 8
        %s188 = scalar_lea.vmem [#allocation2], %s187
        %p189 = pneg %p39
        %p190 = pneg %p36
        %p191 = pneg %p60
        %p192 = pneg %p57
        %p193 = pneg %p81
        %p194 = pneg %p78
        %p195 = pneg %p107
        %p196 = pneg %p104
        %p197 = scmp.lt.s32.totalorder %s18, 1
        %s198 = scalar_select %p197, %s18, 1
        %s199 = smul.addr %s198, 8
        %s200 = scalar_lea.vmem %s3, %s199
        %p201 = scmp.lt.s32.totalorder %s18, 1
        %s202 = scalar_select %p201, %s18, 1
        %s203 = smul.addr %s202, 8
        %s204 = scalar_lea.vmem %s3, %s203
        %v206 = vld [vmem:[%s173] sm:$0xff]
        %v207 = vpack.c.bf16 %v206, %v206
        %v208 = vld [vmem:[#allocation4] sm:$0xff]
        %v209 = vld [vmem:[#allocation4 + $0x8] sm:$0xff]
        %v210 = vld [vmem:[#allocation4 + $0x10] sm:$0xff]
        %v211 = vld [vmem:[#allocation4 + $0x18] sm:$0xff]
        %v212 = vpack.c.bf16 %v209, %v208
        %v213 = vpack.c.bf16 %v211, %v210
        %v214 = vld [vmem:[%s2] sm:$0x1]
        %v216 = vperm.slane %v214, 0
        %vm218 = vcmask 261120
        %v220 = vsel %vm218, %v207, 0
        %222 = vmatpush.bf16.msra.mxu0 0
        %223 = vmatpush.bf16.msra.mxu0 0
        %224 = vmatpush.bf16.msra.mxu0 0
        %225 = vmatpush.bf16.msra.mxu0 0
        %226 = vmatpush.bf16.msra.mxu0 0
        %227 = vmatpush.bf16.msra.mxu0 0
        %228 = vmatpush.bf16.msra.mxu0 %v213
        %229 = vmatpush.bf16.msra.mxu0 %v212
        %230 = vmatmul.bf16.gmra.mxu0 %v220
        %v231 = vpop.f32.mrf.mxu0
        %v232 = vadd.f32 %v216, %v231
        %v233 = vpop.f32.mrf.mxu0
        %234 = vdwg.mxu0
        %vm235 = vcmask 64512
        %236 = vst.msk [vmem:[%s204] sm:$0xff] %vm235, %v232
        %p237 = scmp.lt.s32.totalorder %s18, 1
        %s238 = scalar_select %p237, %s18, 1
        %s239 = smul.addr %s238, 8
        %s240 = scalar_lea.vmem %s3, %s239
        // Predicated region
        $region41: #{tpu_custom_call.1} parent=31 // pred_check
          %p241 = pneg %p104
        $region42: #{tpu_custom_call.1} parent=31 // pred_check_branch
          %243 = sbr.rel (%p241) target = $region44
        $region43: #{tpu_custom_call.1} parent=31 // pred_region
          _
        $region44: #{tpu_custom_call.1} parent=31 // pred_fallthru
          _
      $region32: #{tpu_custom_call.1} parent=5 // pred_fallthru
        _
      %p244 = scmp.le.s32.totalorder 2, %s13
      // Predicated region
      $region45: #{tpu_custom_call.1} parent=5 // pred_check
        %p245 = pneg %p244
      $region46: #{tpu_custom_call.1} parent=5 // pred_check_branch
        %247 = sbr.rel (%p245) target = $region48
      $region47: #{tpu_custom_call.1} parent=5 // pred_region
        %s248 = ssub.s32 %s13, 2
        // Predicated region
        $region49: #{tpu_custom_call.1} parent=47 // pred_check
          %p249 = pneg %p110
        $region50: #{tpu_custom_call.1} parent=47 // pred_check_branch
          %251 = sbr.rel (%p249) target = $region52
        $region51: #{tpu_custom_call.1} parent=47 // pred_region
          %p252 = scmp.lt.s32.totalorder %s19, 1
          %s253 = scalar_select %p252, %s19, 1
          %s254 = smul.addr %s253, 8
          %s255 = scalar_lea.vmem %s3, %s254
        $region52: #{tpu_custom_call.1} parent=47 // pred_fallthru
          _
      $region48: #{tpu_custom_call.1} parent=5 // pred_fallthru
        _
    $region6: #{tpu_custom_call.1} parent=1 // loop_footer
      %s17 = sadd.s32 1, %s13
    $region7: #{tpu_custom_call.1} parent=1 // loop_footer_branch
      %12 = sbr.rel target = $region3
    $region8: #{tpu_custom_call.1} parent=1 // loop_exit
      _
    %256 = vsyncpa [#allocation3], 1
    %s257 = scalar_lea.sflag [#allocation3], 1
    %258 = vsyncpa %s257, 1
    %259 = vsyncpa [#allocation5], 1

</llo_original>
